<compile_context>
chip_gen: v7x
topology: tpu7x:2x2x1
jax: 0.10.0
libtpu: 0.0.40
codegen_flags: <defaults>
</compile_context>

<pallas_src>
import functools

import jax
import jax.numpy as jnp
from jax.experimental import pallas as pl
from jax.experimental.pallas import tpu as pltpu


# ----------------------------------------------------------------------------
# Fused Pallas kernel
# ----------------------------------------------------------------------------
def _leaky_relu(x):
    # torch.nn.functional.leaky_relu default negative_slope = 0.01
    return jnp.where(x > 0, x, jnp.float32(0.01) * x)


def _fused_decoder_kernel(z_ref, c_ref, *refs, num_layers, non_linear):
    """Whole decoder MLP for one batch tile; activations stay in VMEM/vregs.

    refs = (wz0, wc0, b0, w1, b1, ..., w_{L-1}, b_{L-1}, mu_ref)
    Layer 0 consumes the (virtual) concat [z, c] as z @ Wz + c @ Wc + b.
    LeakyReLU is applied after every layer except the final (mean) layer when
    non_linear=True (matches the PyTorch module).
    """
    mu_ref = refs[-1]
    params = refs[:-1]

    wz0, wc0, b0 = params[0], params[1], params[2]
    x = (jnp.dot(z_ref[...], wz0[...], preferred_element_type=jnp.float32)
         + jnp.dot(c_ref[...], wc0[...], preferred_element_type=jnp.float32)
         + b0[...])
    if non_linear and num_layers > 1:
        x = _leaky_relu(x)

    idx = 3
    for li in range(1, num_layers):
        w, b = params[idx], params[idx + 1]
        idx += 2
        x = jnp.dot(x, w[...], preferred_element_type=jnp.float32) + b[...]
        if non_linear and li < num_layers - 1:
            x = _leaky_relu(x)

    mu_ref[...] = x.astype(mu_ref.dtype)


def fused_decoder_forward(z, c, layers, *, non_linear, tile_n=256):
    """Run the full decoder MLP in one pallas_call.

    layers: list of (W[in, out], b[out]); layers[:-1] are decoder_layers,
            layers[-1] is the mean layer.
    """
    n, hid0 = z.shape
    _, c_dim = c.shape
    num_layers = len(layers)
    out_dim = layers[0 if num_layers == 1 else -1][0].shape[1]
    out_dim = layers[-1][0].shape[1]

    # Split the first weight's rows into the z-part and c-part: removes the
    # (N, hid0+c_dim) concat materialization and the odd K=hid0+c_dim dot.
    w0, b0 = layers[0]
    wz0, wc0 = w0[:hid0, :], w0[hid0:, :]

    flat_params = [wz0, wc0, b0.reshape(1, -1)]
    for (w, b) in layers[1:]:
        flat_params += [w, b.reshape(1, -1)]

    # Batch tiling: pad N to a sublane-friendly multiple of the tile size so
    # large batches pipeline/double-buffer and shard across TensorCores.
    tile = int(min(tile_n, max(8, -(-n // 8) * 8)))
    n_pad = -(-n // tile) * tile
    if n_pad != n:
        z = jnp.pad(z, ((0, n_pad - n), (0, 0)))
        c = jnp.pad(c, ((0, n_pad - n), (0, 0)))
    grid = (n_pad // tile,)

    # Weights/biases get constant block indices -> stay resident in VMEM.
    param_specs = [pl.BlockSpec(p.shape, lambda i: (0, 0)) for p in flat_params]

    # Advisory cost estimate for XLA's scheduler.
    flops = 2 * n_pad * sum(w.shape[0] * w.shape[1] for (w, _) in layers)
    param_bytes = sum(int(p.size) * p.dtype.itemsize for p in flat_params)
    bytes_accessed = int((z.size + c.size) * 4 + param_bytes + n_pad * out_dim * 4)

    # Explicit VMEM budget (BlockSpec double-buffers tiled operands); sized to
    # stay comfortably inside v7x's 64 MiB per-TC VMEM.
    max_dim = max([hid0, c_dim, out_dim] + [w.shape[1] for (w, _) in layers])
    vmem_bytes = 2 * param_bytes + 4 * 2 * tile * max_dim * 4 + (1 << 20)
    vmem_bytes = int(min(max(vmem_bytes, 4 << 20), 48 << 20))

    mu = pl.pallas_call(
        functools.partial(_fused_decoder_kernel,
                          num_layers=num_layers, non_linear=non_linear),
        out_shape=jax.ShapeDtypeStruct((n_pad, out_dim), jnp.float32),
        grid=grid,
        in_specs=[pl.BlockSpec((tile, hid0), lambda i: (i, 0)),
                  pl.BlockSpec((tile, c_dim), lambda i: (i, 0))] + param_specs,
        out_specs=pl.BlockSpec((tile, out_dim), lambda i: (i, 0)),
        compiler_params=pltpu.CompilerParams(
            dimension_semantics=("parallel",),
            vmem_limit_bytes=vmem_bytes),
        cost_estimate=pl.CostEstimate(flops=flops, transcendentals=0,
                                      bytes_accessed=bytes_accessed),
    )(z, c, *flat_params)
    return mu[:n]


# ----------------------------------------------------------------------------
# Decoder module (parameter setup is plain-JAX glue; hot path is one kernel)
# ----------------------------------------------------------------------------
class Decoder:
    def __init__(self, input_dim, hidden_dim, c_dim, non_linear=False,
                 init_logvar=-3, key=None):
        self.input_size = input_dim
        self.hidden_dims = hidden_dim[::-1]
        self.non_linear = non_linear
        self.init_logvar = init_logvar
        self.c_dim = c_dim

        self.layer_sizes_decoder = list(self.hidden_dims) + [input_dim]
        self.layer_sizes_decoder[0] = self.hidden_dims[0] + c_dim

        if key is None:
            key = jax.random.PRNGKey(0)

        # Deterministic init matching torch.nn.Linear default
        # (uniform in [-1/sqrt(fan_in), 1/sqrt(fan_in)]). Weights stored
        # [in_features, out_features] so x @ W + b == torch's x @ W.T + b.
        def init_linear(k, fan_in, fan_out):
            kw, kb = jax.random.split(k)
            bound = 1.0 / jnp.sqrt(jnp.float32(fan_in))
            w = jax.random.uniform(kw, (fan_in, fan_out), jnp.float32, -bound, bound)
            b = jax.random.uniform(kb, (fan_out,), jnp.float32, -bound, bound)
            return w, b

        dims = self.layer_sizes_decoder
        keys = jax.random.split(key, len(dims))

        # decoder_layers = all Linear layers except the last one
        self.decoder_layers = []
        for i, (d0, d1) in enumerate(zip(dims[:-2], dims[1:-1])):
            self.decoder_layers.append(init_linear(keys[i], d0, d1))

        # decoder_mean_layer = final Linear
        self.decoder_mean_layer = init_linear(keys[len(dims) - 2], dims[-2], dims[-1])

        # logvar_out parameter, shape (1, input_dim)
        self.logvar_out = jnp.full((1, self.input_size), jnp.float32(init_logvar))
        # Hoisted per perf review: scale depends only on logvar_out (not on
        # z/c), so compute it once here instead of a per-forward kernel launch.
        self.scale_out = jnp.exp(jnp.float32(0.5) * self.logvar_out)

    def forward(self, z, c):
        c = c.reshape(-1, self.c_dim)
        layers = list(self.decoder_layers) + [self.decoder_mean_layer]
        mu_out = fused_decoder_forward(z, c, layers, non_linear=self.non_linear)
        # TODO(synk): torch.distributions.Normal has no Pallas analogue; we
        # return its defining parameters (loc, scale) instead.
        return mu_out, self.scale_out


# ----------------------------------------------------------------------------
# Pure-JAX reference for correctness checking
# ----------------------------------------------------------------------------
def reference_forward(dec, z, c):
    c = c.reshape(-1, dec.c_dim)
    x = jnp.concatenate([z, c], axis=1)
    for (w, b) in dec.decoder_layers:
        x = x @ w + b
        if dec.non_linear:
            x = jnp.where(x > 0, x, 0.01 * x)
    mu = x @ dec.decoder_mean_layer[0] + dec.decoder_mean_layer[1]
    scale = jnp.exp(dec.logvar_out) ** 0.5
    return mu, scale


if __name__ == "__main__":
    # Small shapes consistent with the module:
    #   hidden_dim = [64, 32]  -> reversed [32, 64], so latent dim = 32
    #   c_dim = 4, input_dim = 16, batch = 8
    input_dim, hidden_dim, c_dim, batch = 16, [64, 32], 4, 8

    root = jax.random.PRNGKey(0)
    k_params, k_z, k_c = jax.random.split(root, 3)

    dec = Decoder(input_dim, hidden_dim, c_dim, non_linear=True,
                  init_logvar=-3, key=k_params)

    z = jax.random.normal(k_z, (batch, dec.hidden_dims[0]), jnp.float32)  # (8, 32)
    c = jax.random.normal(k_c, (batch, c_dim), jnp.float32)               # (8, 4)

    mu, scale = dec.forward(z, c)
    jax.block_until_ready(mu)
    jax.block_until_ready(scale)

    mu_ref, scale_ref = reference_forward(dec, z, c)
    assert mu.shape == (batch, input_dim)
    assert scale.shape == (1, input_dim)
    assert jnp.allclose(mu, mu_ref, atol=1e-4, rtol=1e-4)
    assert jnp.allclose(scale, scale_ref, atol=1e-6, rtol=1e-6)

    print("KERNEL_OK")
</pallas_src>

<mosaic_0001>
module attributes {stable_mosaic.version = 11 : i64} {
  func.func @_fused_decoder_kernel(%arg0: i32, %arg1: memref<8x32xf32, #tpu.memory_space<vmem>>, %arg2: memref<8x4xf32, #tpu.memory_space<vmem>>, %arg3: memref<32x64xf32, #tpu.memory_space<vmem>>, %arg4: memref<4x64xf32, #tpu.memory_space<vmem>>, %arg5: memref<1x64xf32, #tpu.memory_space<vmem>>, %arg6: memref<64x16xf32, #tpu.memory_space<vmem>>, %arg7: memref<1x16xf32, #tpu.memory_space<vmem>>, %arg8: memref<8x16xf32, #tpu.memory_space<vmem>>) attributes {dimension_semantics = [#tpu.dimension_semantics<parallel>], iteration_bounds = array<i64: 1>, scalar_prefetch = 0 : i64, scratch_operands = 0 : i64, tpu.core_type = #tpu.core_type<tc>, window_params = [{transform_indices = @transform_0, window_bounds = array<i64: 8, 32>}, {transform_indices = @transform_1, window_bounds = array<i64: 8, 4>}, {pipeline_mode = #tpu.pipeline_mode<synchronous>, transform_indices = @transform_2, window_bounds = array<i64: 32, 64>}, {pipeline_mode = #tpu.pipeline_mode<synchronous>, transform_indices = @transform_3, window_bounds = array<i64: 4, 64>}, {pipeline_mode = #tpu.pipeline_mode<synchronous>, transform_indices = @transform_4, window_bounds = array<i64: 1, 64>}, {pipeline_mode = #tpu.pipeline_mode<synchronous>, transform_indices = @transform_5, window_bounds = array<i64: 64, 16>}, {pipeline_mode = #tpu.pipeline_mode<synchronous>, transform_indices = @transform_6, window_bounds = array<i64: 1, 16>}, {transform_indices = @transform_7, window_bounds = array<i64: 8, 16>}]} {
    %c0 = arith.constant 0 : index
    %c0_0 = arith.constant 0 : index
    %0 = vector.load %arg1[%c0, %c0_0] : memref<8x32xf32, #tpu.memory_space<vmem>>, vector<8x32xf32>
    %c0_1 = arith.constant 0 : index
    %c0_2 = arith.constant 0 : index
    %1 = vector.load %arg3[%c0_1, %c0_2] : memref<32x64xf32, #tpu.memory_space<vmem>>, vector<32x64xf32>
    %cst = arith.constant dense<0.000000e+00> : vector<8x64xf32>
    %2 = tpu.matmul %0, %1, %cst {dimension_numbers = #tpu.dot_dimension_numbers<[1], [0], [0], [1], [0, 0, 1, 1], [], []>} : vector<8x32xf32>, vector<32x64xf32>, vector<8x64xf32> -> vector<8x64xf32>
    %c0_3 = arith.constant 0 : index
    %c0_4 = arith.constant 0 : index
    %3 = vector.load %arg2[%c0_3, %c0_4] : memref<8x4xf32, #tpu.memory_space<vmem>>, vector<8x4xf32>
    %c0_5 = arith.constant 0 : index
    %c0_6 = arith.constant 0 : index
    %4 = vector.load %arg4[%c0_5, %c0_6] : memref<4x64xf32, #tpu.memory_space<vmem>>, vector<4x64xf32>
    %cst_7 = arith.constant dense<0.000000e+00> : vector<8x64xf32>
    %5 = tpu.matmul %3, %4, %cst_7 {dimension_numbers = #tpu.dot_dimension_numbers<[1], [0], [0], [1], [0, 0, 1, 1], [], []>} : vector<8x4xf32>, vector<4x64xf32>, vector<8x64xf32> -> vector<8x64xf32>
    %6 = arith.addf %2, %5 : vector<8x64xf32>
    %c0_8 = arith.constant 0 : index
    %c0_9 = arith.constant 0 : index
    %7 = vector.load %arg5[%c0_8, %c0_9] : memref<1x64xf32, #tpu.memory_space<vmem>>, vector<1x64xf32>
    %8 = vector.broadcast %7 : vector<1x64xf32> to vector<8x64xf32>
    %9 = arith.addf %6, %8 : vector<8x64xf32>
    %cst_10 = arith.constant 0.000000e+00 : f32
    %10 = vector.broadcast %cst_10 : f32 to vector<8x64xf32>
    %11 = arith.cmpf ogt, %9, %10 : vector<8x64xf32>
    %cst_11 = arith.constant 0.00999999977 : f32
    %12 = vector.broadcast %cst_11 : f32 to vector<8x64xf32>
    %13 = arith.mulf %12, %9 : vector<8x64xf32>
    %14 = arith.select %11, %9, %13 : vector<8x64xi1>, vector<8x64xf32>
    %c0_12 = arith.constant 0 : index
    %c0_13 = arith.constant 0 : index
    %15 = vector.load %arg6[%c0_12, %c0_13] : memref<64x16xf32, #tpu.memory_space<vmem>>, vector<64x16xf32>
    %cst_14 = arith.constant dense<0.000000e+00> : vector<8x16xf32>
    %16 = tpu.matmul %14, %15, %cst_14 {dimension_numbers = #tpu.dot_dimension_numbers<[1], [0], [0], [1], [0, 0, 1, 1], [], []>} : vector<8x64xf32>, vector<64x16xf32>, vector<8x16xf32> -> vector<8x16xf32>
    %c0_15 = arith.constant 0 : index
    %c0_16 = arith.constant 0 : index
    %17 = vector.load %arg7[%c0_15, %c0_16] : memref<1x16xf32, #tpu.memory_space<vmem>>, vector<1x16xf32>
    %18 = vector.broadcast %17 : vector<1x16xf32> to vector<8x16xf32>
    %19 = arith.addf %16, %18 : vector<8x16xf32>
    %c0_17 = arith.constant 0 : index
    %c0_18 = arith.constant 0 : index
    %20 = vector.load %arg8[%c0_17, %c0_18] : memref<8x16xf32, #tpu.memory_space<vmem>>, vector<8x16xf32>
    tpu.vector_store %arg8[%c0_17, %c0_18], %19 {strides = array<i32>} : memref<8x16xf32, #tpu.memory_space<vmem>>, vector<8x16xf32>,
    return
  }
  func.func @transform_0(%arg0: i32) -> (i32, i32) {
    %c0_i32 = arith.constant 0 : i32
    %c0_i32_0 = arith.constant 0 : i32
    return %arg0, %c0_i32 : i32, i32
  }
  func.func @transform_1(%arg0: i32) -> (i32, i32) {
    %c0_i32 = arith.constant 0 : i32
    %c0_i32_0 = arith.constant 0 : i32
    return %arg0, %c0_i32 : i32, i32
  }
  func.func @transform_2(%arg0: i32) -> (i32, i32) {
    %c0_i32 = arith.constant 0 : i32
    %c0_i32_0 = arith.constant 0 : i32
    %c0_i32_1 = arith.constant 0 : i32
    return %c0_i32, %c0_i32_0 : i32, i32
  }
  func.func @transform_3(%arg0: i32) -> (i32, i32) {
    %c0_i32 = arith.constant 0 : i32
    %c0_i32_0 = arith.constant 0 : i32
    %c0_i32_1 = arith.constant 0 : i32
    return %c0_i32, %c0_i32_0 : i32, i32
  }
  func.func @transform_4(%arg0: i32) -> (i32, i32) {
    %c0_i32 = arith.constant 0 : i32
    %c0_i32_0 = arith.constant 0 : i32
    %c0_i32_1 = arith.constant 0 : i32
    return %c0_i32, %c0_i32_0 : i32, i32
  }
  func.func @transform_5(%arg0: i32) -> (i32, i32) {
    %c0_i32 = arith.constant 0 : i32
    %c0_i32_0 = arith.constant 0 : i32
    %c0_i32_1 = arith.constant 0 : i32
    return %c0_i32, %c0_i32_0 : i32, i32
  }
  func.func @transform_6(%arg0: i32) -> (i32, i32) {
    %c0_i32 = arith.constant 0 : i32
    %c0_i32_0 = arith.constant 0 : i32
    %c0_i32_1 = arith.constant 0 : i32
    return %c0_i32, %c0_i32_0 : i32, i32
  }
  func.func @transform_7(%arg0: i32) -> (i32, i32) {
    %c0_i32 = arith.constant 0 : i32
    %c0_i32_0 = arith.constant 0 : i32
    return %arg0, %c0_i32 : i32, i32
  }
}

</mosaic_0001>

<llo_original>
// kernel: tpu_custom_call.1
$region0: #{tpu_custom_call.1}
  #allocation0 [shape = 'u32[]', space=smem, size = 0x4, offset = 0x4, fixed_abs, tag = 'smem constant byte address 0x4 - core index']
  #allocation1 [shape = 'u32[144,128]{1,0:T(1,128)}', space=vmem, size = 0x12000, scoped, tag = 'internal scratch']
  %s0 = inlined_call_operand.vmem [shape: f32[8,32], index: 0, kind: input, shape index: {}]
  %s1 = inlined_call_operand.vmem [shape: f32[8,4], index: 1, kind: input, shape index: {}]
  %s2 = inlined_call_operand.vmem [shape: f32[32,64], index: 2, kind: input, shape index: {}]
  %s3 = inlined_call_operand.vmem [shape: f32[4,64], index: 3, kind: input, shape index: {}]
  %s4 = inlined_call_operand.vmem [shape: f32[1,64], index: 4, kind: input, shape index: {}]
  %s5 = inlined_call_operand.vmem [shape: f32[64,16], index: 5, kind: input, shape index: {}]
  %s6 = inlined_call_operand.vmem [shape: f32[1,16], index: 6, kind: input, shape index: {}]
  %s7 = inlined_call_operand.hbm [shape: f32[8,16], index: 7, kind: output, shape index: {}]
  %s8 = sld [smem:[#allocation0]]
  $region38: #{tpu_custom_call.1} parent=0
    _
  %s10 = ssub.s32 1, %s8
  %s11 = scalar_select 0, %s10, %s8
  $region1: #{tpu_custom_call.1} parent=0
    #allocation2 [shape = 'u8[4096]{0}', space=vmem, size = 0x1000, scoped, tag = 'output window, operand 0, single buffered']
    #allocation3 [shape = 's32[1]{0}', space=sflag, size = 0x4, scoped, tag = 'scoped memory for tpu_custom_call.1']
    %12 = vsyncpa [#allocation3], 0
    // Predicated region
    $region2: #{tpu_custom_call.1} parent=1 // pred_check
      _
    $region3: #{tpu_custom_call.1} parent=1 // pred_check_branch
      %14 = sbr.rel (0) target = $region5
    $region4: #{tpu_custom_call.1} parent=1 // pred_region
      _
    $region5: #{tpu_custom_call.1} parent=1 // pred_fallthru
      _
    // Predicated region
    $region6: #{tpu_custom_call.1} parent=1 // pred_check
      _
    $region7: #{tpu_custom_call.1} parent=1 // pred_check_branch
      %16 = sbr.rel (0) target = $region9
    $region8: #{tpu_custom_call.1} parent=1 // pred_region
      _
    $region9: #{tpu_custom_call.1} parent=1 // pred_fallthru
      _
    // Predicated region
    $region10: #{tpu_custom_call.1} parent=1 // pred_check
      _
    $region11: #{tpu_custom_call.1} parent=1 // pred_check_branch
      %18 = sbr.rel (0) target = $region13
    $region12: #{tpu_custom_call.1} parent=1 // pred_region
      _
    $region13: #{tpu_custom_call.1} parent=1 // pred_fallthru
      _
    // Predicated region
    $region14: #{tpu_custom_call.1} parent=1 // pred_check
      _
    $region15: #{tpu_custom_call.1} parent=1 // pred_check_branch
      %20 = sbr.rel (0) target = $region17
    $region16: #{tpu_custom_call.1} parent=1 // pred_region
      _
    $region17: #{tpu_custom_call.1} parent=1 // pred_fallthru
      _
    // Predicated region
    $region18: #{tpu_custom_call.1} parent=1 // pred_check
      _
    $region19: #{tpu_custom_call.1} parent=1 // pred_check_branch
      %22 = sbr.rel (0) target = $region21
    $region20: #{tpu_custom_call.1} parent=1 // pred_region
      _
    $region21: #{tpu_custom_call.1} parent=1 // pred_fallthru
      _
    // Predicated region
    $region22: #{tpu_custom_call.1} parent=1 // pred_check
      _
    $region23: #{tpu_custom_call.1} parent=1 // pred_check_branch
      %24 = sbr.rel (0) target = $region25
    $region24: #{tpu_custom_call.1} parent=1 // pred_region
      _
    $region25: #{tpu_custom_call.1} parent=1 // pred_fallthru
      _
    // Predicated region
    $region26: #{tpu_custom_call.1} parent=1 // pred_check
      _
    $region27: #{tpu_custom_call.1} parent=1 // pred_check_branch
      %26 = sbr.rel (0) target = $region29
    $region28: #{tpu_custom_call.1} parent=1 // pred_region
      _
    $region29: #{tpu_custom_call.1} parent=1 // pred_fallthru
      _
    %v27 = vld [vmem:[%s0] sm:$0xff]
    %v28 = vld [vmem:[%s2] sm:$0xff]
    %v29 = vld [vmem:[%s2 + $0x8] sm:$0xff]
    %v30 = vld [vmem:[%s2 + $0x10] sm:$0xff]
    %v31 = vld [vmem:[%s2 + $0x18] sm:$0xff]
    %v32 = vld [vmem:[%s1] sm:$0xff]
    %v33 = vld [vmem:[%s3] sm:$0xf]
    %vm34 = vcmask 31744
    %v36 = vsel %vm34, %v32, 0
    %vm38 = vcmask 1043456
    %v40 = vsel %vm38, %v33, 0
    %42 = vmatprep.subr.mxu0 0.0
    %43 = vmatpush1.msra.mxu0 %v40
    %44 = vmatprep.subr.mxu0 0.0
    %45 = vmatpush1.msra.mxu0 0.0
    %46 = vmatprep.subr.mxu0 0.0
    %47 = vmatpush1.msra.mxu0 0.0
    %48 = vmatprep.subr.mxu0 0.0
    %49 = vmatpush1.msra.mxu0 0.0
    %50 = vmatprep.subr.mxu0 0.0
    %51 = vmatpush1.msra.mxu0 0.0
    %52 = vmatprep.subr.mxu0 0.0
    %53 = vmatpush1.msra.mxu0 0.0
    %54 = vmatprep.subr.mxu0 0.0
    %55 = vmatpush1.msra.mxu0 0.0
    %56 = vmatprep.subr.mxu0 0.0
    %57 = vmatpush1.msra.mxu0 0.0
    %58 = vmatprep.subr.mxu0 0.0
    %59 = vmatpush1.msra.mxu0 0.0
    %60 = vmatprep.subr.mxu0 0.0
    %61 = vmatpush1.msra.mxu0 0.0
    %62 = vmatprep.subr.mxu0 0.0
    %63 = vmatpush1.msra.mxu0 0.0
    %64 = vmatprep.subr.mxu0 0.0
    %65 = vmatpush1.msra.mxu0 0.0
    %66 = vmatprep.subr.mxu0 0.0
    %67 = vmatpush1.msra.mxu0 0.0
    %68 = vmatprep.subr.mxu0 0.0
    %69 = vmatpush1.msra.mxu0 0.0
    %70 = vmatprep.subr.mxu0 0.0
    %71 = vmatpush1.msra.mxu0 0.0
    %72 = vmatprep.subr.mxu0 0.0
    %73 = vmatpush1.msra.mxu0 0.0
    %74 = vmatprep.subr.mxu0 0.0
    %75 = vmatpush1.msra.mxu0 0.0
    %76 = vmatprep.subr.mxu0 0.0
    %77 = vmatpush1.msra.mxu0 0.0
    %78 = vmatprep.subr.mxu0 0.0
    %79 = vmatpush1.msra.mxu0 0.0
    %80 = vmatprep.subr.mxu0 0.0
    %81 = vmatpush1.msra.mxu0 0.0
    %82 = vmatprep.subr.mxu0 0.0
    %83 = vmatpush1.msra.mxu0 0.0
    %84 = vmatprep.subr.mxu0 0.0
    %85 = vmatpush1.msra.mxu0 0.0
    %86 = vmatprep.subr.mxu0 0.0
    %87 = vmatpush1.msra.mxu0 0.0
    %88 = vmatprep.subr.mxu0 0.0
    %89 = vmatpush1.msra.mxu0 0.0
    %90 = vmatprep.subr.mxu0 0.0
    %91 = vmatpush1.msra.mxu0 0.0
    %92 = vmatprep.subr.mxu0 0.0
    %93 = vmatpush1.msra.mxu0 0.0
    %94 = vmatprep.subr.mxu0 0.0
    %95 = vmatpush1.msra.mxu0 0.0
    %96 = vmatprep.subr.mxu0 0.0
    %97 = vmatpush1.msra.mxu0 0.0
    %98 = vmatprep.subr.mxu0 0.0
    %99 = vmatpush1.msra.mxu0 0.0
    %100 = vmatprep.subr.mxu0 0.0
    %101 = vmatpush1.msra.mxu0 0.0
    %102 = vmatprep.subr.mxu0 0.0
    %103 = vmatpush1.msra.mxu0 0.0
    %104 = vmatprep.subr.mxu0 0.0
    %105 = vmatpush1.msra.mxu0 0.0
    %106 = vmatprep.mubr.f32.mxu0 0.0
    %107 = vmatmul.mubr.f32.gmra.mrb[0].mxu0 %v36
    %v108 = vpop.f32.mrb[0].mxu0
    %v109 = vadd.f32 0.0, %v108
    %v110 = vpop.f32.mrb[0].mxu0
    %111 = vdwg.mxu0
    %vm112 = vcmask 261120
    %v114 = vsel %vm112, %v27, 0
    %116 = vmatprep.subr.mxu0 0.0
    %117 = vmatpush1.msra.mxu0 %v28
    %118 = vmatprep.subr.mxu0 0.0
    %119 = vmatpush1.msra.mxu0 %v29
    %120 = vmatprep.subr.mxu0 0.0
    %121 = vmatpush1.msra.mxu0 %v30
    %122 = vmatprep.subr.mxu0 0.0
    %123 = vmatpush1.msra.mxu0 %v31
    %124 = vmatprep.subr.mxu0 0.0
    %125 = vmatpush1.msra.mxu0 0.0
    %126 = vmatprep.subr.mxu0 0.0
    %127 = vmatpush1.msra.mxu0 0.0
    %128 = vmatprep.subr.mxu0 0.0
    %129 = vmatpush1.msra.mxu0 0.0
    %130 = vmatprep.subr.mxu0 0.0
    %131 = vmatpush1.msra.mxu0 0.0
    %132 = vmatprep.subr.mxu0 0.0
    %133 = vmatpush1.msra.mxu0 0.0
    %134 = vmatprep.subr.mxu0 0.0
    %135 = vmatpush1.msra.mxu0 0.0
    %136 = vmatprep.subr.mxu0 0.0
    %137 = vmatpush1.msra.mxu0 0.0
    %138 = vmatprep.subr.mxu0 0.0
    %139 = vmatpush1.msra.mxu0 0.0
    %140 = vmatprep.subr.mxu0 0.0
    %141 = vmatpush1.msra.mxu0 0.0
    %142 = vmatprep.subr.mxu0 0.0
    %143 = vmatpush1.msra.mxu0 0.0
    %144 = vmatprep.subr.mxu0 0.0
    %145 = vmatpush1.msra.mxu0 0.0
    %146 = vmatprep.subr.mxu0 0.0
    %147 = vmatpush1.msra.mxu0 0.0
    %148 = vmatprep.subr.mxu0 0.0
    %149 = vmatpush1.msra.mxu0 0.0
    %150 = vmatprep.subr.mxu0 0.0
    %151 = vmatpush1.msra.mxu0 0.0
    %152 = vmatprep.subr.mxu0 0.0
    %153 = vmatpush1.msra.mxu0 0.0
    %154 = vmatprep.subr.mxu0 0.0
    %155 = vmatpush1.msra.mxu0 0.0
    %156 = vmatprep.subr.mxu0 0.0
    %157 = vmatpush1.msra.mxu0 0.0
    %158 = vmatprep.subr.mxu0 0.0
    %159 = vmatpush1.msra.mxu0 0.0
    %160 = vmatprep.subr.mxu0 0.0
    %161 = vmatpush1.msra.mxu0 0.0
    %162 = vmatprep.subr.mxu0 0.0
    %163 = vmatpush1.msra.mxu0 0.0
    %164 = vmatprep.subr.mxu0 0.0
    %165 = vmatpush1.msra.mxu0 0.0
    %166 = vmatprep.subr.mxu0 0.0
    %167 = vmatpush1.msra.mxu0 0.0
    %168 = vmatprep.subr.mxu0 0.0
    %169 = vmatpush1.msra.mxu0 0.0
    %170 = vmatprep.subr.mxu0 0.0
    %171 = vmatpush1.msra.mxu0 0.0
    %172 = vmatprep.subr.mxu0 0.0
    %173 = vmatpush1.msra.mxu0 0.0
    %174 = vmatprep.subr.mxu0 0.0
    %175 = vmatpush1.msra.mxu0 0.0
    %176 = vmatprep.subr.mxu0 0.0
    %177 = vmatpush1.msra.mxu0 0.0
    %178 = vmatprep.subr.mxu0 0.0
    %179 = vmatpush1.msra.mxu0 0.0
    %180 = vmatprep.mubr.f32.mxu0 0.0
    %181 = vmatmul.mubr.f32.gmra.mrb[0].mxu0 %v114
    %v182 = vpop.f32.mrb[0].mxu0
    %v183 = vadd.f32 %v109, %v182
    %v184 = vpop.f32.mrb[0].mxu0
    %185 = vdwg.mxu0
    %v186 = vld [vmem:[%s4] sm:$0x1]
    %v188 = vlaneseq
    %v189 = vshrl.u32 %v188, 7
    %v190 = vsub.s32 0, %v189
    %v191 = vrot.slane %v186, %v190
    %v193 = vadd.f32 %v183, %v191
    %vm194 = vcmp.gt.f32.partialorder %v193, 0.0
    %v195 = vmul.f32 %v193, 0.01
    %v196 = vsel %vm194, %v193, %v195
    %v197 = vld [vmem:[%s5] sm:$0xff]
    %v198 = vld [vmem:[%s5 + $0x8] sm:$0xff]
    %v199 = vld [vmem:[%s5 + $0x10] sm:$0xff]
    %v200 = vld [vmem:[%s5 + $0x18] sm:$0xff]
    %v201 = vld [vmem:[%s5 + $0x20] sm:$0xff]
    %v202 = vld [vmem:[%s5 + $0x28] sm:$0xff]
    %v203 = vld [vmem:[%s5 + $0x30] sm:$0xff]
    %v204 = vld [vmem:[%s5 + $0x38] sm:$0xff]
    %v205 = vld [vmem:[%s6] sm:$0x1]
    %v207 = vlaneseq
    %v208 = vshrl.u32 %v207, 7
    %v209 = vsub.s32 0, %v208
    %v210 = vrot.slane %v205, %v209
    %vm212 = vcmask 523264
    %v214 = vsel %vm212, %v196, 0
    %216 = vmatprep.subr.mxu0 0.0
    %217 = vmatpush1.msra.mxu0 %v197
    %218 = vmatprep.subr.mxu0 0.0
    %219 = vmatpush1.msra.mxu0 %v198
    %220 = vmatprep.subr.mxu0 0.0
    %221 = vmatpush1.msra.mxu0 %v199
    %222 = vmatprep.subr.mxu0 0.0
    %223 = vmatpush1.msra.mxu0 %v200
    %224 = vmatprep.subr.mxu0 0.0
    %225 = vmatpush1.msra.mxu0 %v201
    %226 = vmatprep.subr.mxu0 0.0
    %227 = vmatpush1.msra.mxu0 %v202
    %228 = vmatprep.subr.mxu0 0.0
    %229 = vmatpush1.msra.mxu0 %v203
    %230 = vmatprep.subr.mxu0 0.0
    %231 = vmatpush1.msra.mxu0 %v204
    %232 = vmatprep.subr.mxu0 0.0
    %233 = vmatpush1.msra.mxu0 0.0
    %234 = vmatprep.subr.mxu0 0.0
    %235 = vmatpush1.msra.mxu0 0.0
    %236 = vmatprep.subr.mxu0 0.0
    %237 = vmatpush1.msra.mxu0 0.0
    %238 = vmatprep.subr.mxu0 0.0
    %239 = vmatpush1.msra.mxu0 0.0
    %240 = vmatprep.subr.mxu0 0.0
    %241 = vmatpush1.msra.mxu0 0.0
    %242 = vmatprep.subr.mxu0 0.0
    %243 = vmatpush1.msra.mxu0 0.0
    %244 = vmatprep.subr.mxu0 0.0
    %245 = vmatpush1.msra.mxu0 0.0
    %246 = vmatprep.subr.mxu0 0.0
    %247 = vmatpush1.msra.mxu0 0.0
    %248 = vmatprep.subr.mxu0 0.0
    %249 = vmatpush1.msra.mxu0 0.0
    %250 = vmatprep.subr.mxu0 0.0
    %251 = vmatpush1.msra.mxu0 0.0
    %252 = vmatprep.subr.mxu0 0.0
    %253 = vmatpush1.msra.mxu0 0.0
    %254 = vmatprep.subr.mxu0 0.0
    %255 = vmatpush1.msra.mxu0 0.0
    %256 = vmatprep.subr.mxu0 0.0
    %257 = vmatpush1.msra.mxu0 0.0
    %258 = vmatprep.subr.mxu0 0.0
    %259 = vmatpush1.msra.mxu0 0.0
    %260 = vmatprep.subr.mxu0 0.0
    %261 = vmatpush1.msra.mxu0 0.0
    %262 = vmatprep.subr.mxu0 0.0
    %263 = vmatpush1.msra.mxu0 0.0
    %264 = vmatprep.subr.mxu0 0.0
    %265 = vmatpush1.msra.mxu0 0.0
    %266 = vmatprep.subr.mxu0 0.0
    %267 = vmatpush1.msra.mxu0 0.0
    %268 = vmatprep.subr.mxu0 0.0
    %269 = vmatpush1.msra.mxu0 0.0
    %270 = vmatprep.subr.mxu0 0.0
    %271 = vmatpush1.msra.mxu0 0.0
    %272 = vmatprep.subr.mxu0 0.0
    %273 = vmatpush1.msra.mxu0 0.0
    %274 = vmatprep.subr.mxu0 0.0
    %275 = vmatpush1.msra.mxu0 0.0
    %276 = vmatprep.subr.mxu0 0.0
    %277 = vmatpush1.msra.mxu0 0.0
    %278 = vmatprep.subr.mxu0 0.0
    %279 = vmatpush1.msra.mxu0 0.0
    %280 = vmatprep.mubr.f32.mxu0 0.0
    %281 = vmatmul.mubr.f32.gmra.mrb[0].mxu0 %v214
    %v282 = vpop.f32.mrb[0].mxu0
    %v283 = vadd.f32 %v210, %v282
    %v284 = vpop.f32.mrb[0].mxu0
    %285 = vdwg.mxu0
    %vm286 = vcmask 130048
    %287 = vst.msk [vmem:[#allocation2] sm:$0xff] %vm286, %v283
    // Predicated region
    $region30: #{tpu_custom_call.1} parent=1 // pred_check
      _
    $region31: #{tpu_custom_call.1} parent=1 // pred_check_branch
      %289 = sbr.rel (0) target = $region33
    $region32: #{tpu_custom_call.1} parent=1 // pred_region
      %s291 = ssub.s32 128, 128
      %292 = vsyncadd [#allocation3], %s291
      %s294 = sshll.u32 [#allocation2], 4
      %s295 = int_to_ptr.vmem [resolvable:$true] %s294
      %297 = dma.vmem_to_hbm [thread:$0]  %s295, 128, %s7, [#allocation3]
    $region33: #{tpu_custom_call.1} parent=1 // pred_fallthru
      _
    // Predicated region
    $region34: #{tpu_custom_call.1} parent=1 // pred_check
      _
    $region35: #{tpu_custom_call.1} parent=1 // pred_check_branch
      %299 = sbr.rel (0) target = $region37
    $region36: #{tpu_custom_call.1} parent=1 // pred_region
      %300 = dma.done [#allocation3], 128
    $region37: #{tpu_custom_call.1} parent=1 // pred_fallthru
      _
    %301 = vsyncpa [#allocation3], 1

</llo_original>
